<compile_context>
chip_gen: v5e
topology: v5e:2x2
jax: 0.10.0
libtpu: 0.0.40
codegen_flags: <defaults>
</compile_context>

<pallas_src>
import functools
import math

import jax
import jax.numpy as jnp
from jax import lax
from jax.experimental import pallas as pl
from jax.experimental.pallas import tpu as pltpu


_INV_SQRT2 = 1.0 / math.sqrt(2.0)  # intended value of `1.0 / torch.sqrt(2)`


def _unique_column_sources(c):
    """Source lane indices for the unique [v1 | v2] column block.

    Matches PyTorch nearest interpolation with an explicit scale_factor
    (src = floor(dst / scale), clamped):
      v1 (scale=2):   2*c columns,          src[j] = j // 2
      v2 (scale=0.1): floor(0.1*c) columns, src[j] = min(10*j, c-1)
    """
    up = [j // 2 for j in range(2 * c)]
    n_dn = int(math.floor(c * 0.1))
    dn = [min(10 * j, c - 1) for j in range(n_dn)]
    return up, dn, n_dn


def _emit_output(g, idx_ref, o_ref, *, c, n_dn):
    """g: (tm, c) f32 standard-normal rows; writes the (tm, 4c + 2*n_dn) output tile."""
    l_half = 2 * c + n_dn
    # Synthesize the one-hot gather tile on-chip: sel[k, j] = (k == idx[j]) / sqrt(2).
    row_ids = lax.broadcasted_iota(jnp.int32, (c, l_half), 0)
    sel = jnp.where(row_ids == idx_ref[...], _INV_SQRT2, 0.0).astype(jnp.float32)
    # One MXU pass produces only the unique columns u = [v1 | v2].
    u = jnp.dot(g, sel, preferred_element_type=jnp.float32)
    v1 = u[:, : 2 * c].astype(o_ref.dtype)
    # cat([v1, v1, v2, v2], dim=-1): duplicates are plain dense lane-range stores.
    o_ref[:, 0 : 2 * c] = v1
    o_ref[:, 2 * c : 4 * c] = v1
    if n_dn > 0:
        v2 = u[:, 2 * c :].astype(o_ref.dtype)
        o_ref[:, 4 * c : 4 * c + n_dn] = v2
        o_ref[:, 4 * c + n_dn :] = v2


def _fused_rng_kernel(seed_ref, idx_ref, o_ref, *, c, n_dn, tm):
    # Per-tile seed so megacore-sharded ("parallel") grid steps draw independent streams.
    pltpu.prng_seed(seed_ref[0] + pl.program_id(0))
    g = pltpu.stateful_normal((tm, c), jnp.float32)
    _emit_output(g, idx_ref, o_ref, c=c, n_dn=n_dn)


def _slab_kernel(seed_ref, idx_ref, g_ref, o_ref, *, c, n_dn):
    del seed_ref  # unused: randoms supplied from outside the kernel
    _emit_output(g_ref[...], idx_ref, o_ref, c=c, n_dn=n_dn)


def _pick_row_tile(r, c, l_half, l_out, budget_bytes=24 * 1024 * 1024):
    """Largest row tile (multiple of 8, capped at 512) whose working set fits VMEM.

    Budgeted against v7x's 64 MiB VMEM: double-buffered output block + normal slab
    + matmul result + on-chip one-hot tile, with headroom for the compiler.
    """
    tm = min(512, r)
    if tm != r:
        tm = max(8, (tm // 8) * 8)

    def est(t):
        return 4 * (2 * t * l_out + t * c + t * l_half + c * l_half) + (1 << 20)

    while tm > 8 and est(tm) > budget_bytes:
        tm = max(8, ((tm // 2) // 8) * 8)
    return tm


def model_forward(x1, x2, key):
    """Equivalent of Model.forward(x1, x2); `key` replaces torch's global RNG state."""
    del x1  # discarded by the reference model (overwritten by randn_like(x2))
    b, c, l = x2.shape
    out_dtype = x2.dtype

    up, dn, n_dn = _unique_column_sources(c)
    l_half = 2 * c + n_dn            # unique columns [v1 | v2]
    l_out = 2 * l_half               # cat([v1, v1, v2, v2])
    r = b * l                        # rows of the (implicitly) transposed random tensor

    idx = jnp.asarray(up + dn, dtype=jnp.int32).reshape(1, l_half)
    seed = jax.random.randint(key, (1,), 0, jnp.iinfo(jnp.int32).max, dtype=jnp.int32)

    tm = _pick_row_tile(r, c, l_half, l_out)
    grid = (pl.cdiv(r, tm),)
    out_shape = jax.ShapeDtypeStruct((r, l_out), out_dtype)
    compiler_params = pltpu.CompilerParams(
        dimension_semantics=("parallel",),      # long row-tile axis -> both TCs busy
        vmem_limit_bytes=48 * 1024 * 1024,
    )
    idx_spec = pl.BlockSpec((1, l_half), lambda i, s: (0, 0))
    out_spec = pl.BlockSpec((tm, l_out), lambda i, s: (i, 0))

    def _fused():
        fn = pl.pallas_call(
            functools.partial(_fused_rng_kernel, c=c, n_dn=n_dn, tm=tm),
            out_shape=out_shape,
            grid_spec=pltpu.PrefetchScalarGridSpec(
                num_scalar_prefetch=1,
                grid=grid,
                in_specs=[idx_spec],
                out_specs=out_spec,
            ),
            compiler_params=compiler_params,
        )
        return jax.block_until_ready(fn(seed, idx))

    def _fallback():
        # Same kernel minus in-kernel RNG: the Gaussian slab is generated by XLA
        # directly in the transposed (r, c) layout, so there is still no transpose.
        g = jax.random.normal(key, (r, c), dtype=jnp.float32)
        fn = pl.pallas_call(
            functools.partial(_slab_kernel, c=c, n_dn=n_dn),
            out_shape=out_shape,
            grid_spec=pltpu.PrefetchScalarGridSpec(
                num_scalar_prefetch=1,
                grid=grid,
                in_specs=[idx_spec, pl.BlockSpec((tm, c), lambda i, s: (i, 0))],
                out_specs=out_spec,
            ),
            compiler_params=compiler_params,
        )
        return fn(seed, idx, g)

    try:
        out2d = _fused()
    except Exception:
        # TODO(synk): drop this fallback once pltpu.stateful_normal is guaranteed
        # on the target jax version (in-kernel RNG saves ~1.5x HBM traffic).
        out2d = _fallback()

    return out2d.reshape(b, l, l_out)


if __name__ == "__main__":
    root = jax.random.PRNGKey(0)
    k1, k2, k_rng = jax.random.split(root, 3)

    # Small (B, C, L) inputs consistent with the module; C >= 10 so the
    # scale_factor=0.1 branch is non-empty.
    B, C, L = 2, 20, 16
    x1 = jax.random.normal(k1, (B, C, L), dtype=jnp.float32)
    x2 = jax.random.normal(k2, (B, C, L), dtype=jnp.float32)

    out = jax.block_until_ready(model_forward(x1, x2, k_rng))

    # --- structural checks of the forward-pass semantics --------------------
    D = int(math.floor(C * 0.1))
    L_OUT = 4 * C + 2 * D
    assert out.shape == (B, L, L_OUT), (out.shape, (B, L, L_OUT))
    assert out.dtype == x2.dtype

    v1a = out[..., 0 : 2 * C]
    v1b = out[..., 2 * C : 4 * C]
    v2a = out[..., 4 * C : 4 * C + D]
    v2b = out[..., 4 * C + D :]
    # cat([v1, v1, v2, v2], dim=2)
    assert bool(jnp.all(v1a == v1b))
    assert bool(jnp.all(v2a == v2b))
    # nearest upsample x2: each source lane duplicated into two adjacent lanes
    assert bool(jnp.all(v1a[..., 0::2] == v1a[..., 1::2]))
    # nearest downsample x0.1: v2[j] = source[10*j] = v1[20*j]
    assert bool(jnp.all(v2a == v1a[..., ::20][..., :D]))
    # randn * (1/sqrt(2)): zero mean, variance 1/2 (loose statistical bounds)
    src = v1a[..., 0::2]
    mean = float(jnp.mean(src))
    var = float(jnp.var(src))
    assert abs(mean) < 0.15, mean
    assert 0.3 < var < 0.7, var

    print("KERNEL_OK")
</pallas_src>

<mosaic_0001>
module attributes {stable_mosaic.version = 11 : i64} {
  func.func @_fused_rng_kernel(%arg0: i32, %arg1: memref<1xi32, #tpu.memory_space<smem>>, %arg2: memref<1x42xi32, #tpu.memory_space<vmem>>, %arg3: memref<32x84xf32, #tpu.memory_space<vmem>>) attributes {dimension_semantics = [#tpu.dimension_semantics<parallel>], iteration_bounds = array<i64: 1>, scalar_prefetch = 1 : i64, scratch_operands = 0 : i64, tpu.core_type = #tpu.core_type<tc>, window_params = [{pipeline_mode = #tpu.pipeline_mode<synchronous>, transform_indices = @transform_0, window_bounds = array<i64: 1, 42>}, {transform_indices = @transform_1, window_bounds = array<i64: 32, 84>}]} {
    %c0 = arith.constant 0 : index
    %0 = memref.load %arg1[%c0] : memref<1xi32, #tpu.memory_space<smem>>
    %1 = arith.addi %0, %arg0 : i32
    "tpu.prng_set_seed_32"(%1) : (i32) -> ()
    %c0_i32 = arith.constant 0 : i32
    %c0_i32_0 = arith.constant 0 : i32
    %cst = arith.constant -0.99999994 : f32
    %cst_1 = arith.constant 1.000000e+00 : f32
    %2 = vector.broadcast %cst : f32 to vector<1x1xf32>
    %3 = vector.broadcast %cst_1 : f32 to vector<1x1xf32>
    %4 = "tpu.prng_random_bits"() : () -> vector<32x20xi32>
    %c9_i32 = arith.constant 9 : i32
    %5 = vector.broadcast %c9_i32 : i32 to vector<32x20xi32>
    %6 = arith.shrui %4, %5 : vector<32x20xi32>
    %c1065353216_i32 = arith.constant 1065353216 : i32
    %7 = vector.broadcast %c1065353216_i32 : i32 to vector<32x20xi32>
    %8 = arith.ori %6, %7 : vector<32x20xi32>
    %9 = tpu.bitcast %8 : vector<32x20xi32> -> vector<32x20xf32>
    %cst_2 = arith.constant 1.000000e+00 : f32
    %10 = vector.broadcast %cst_2 : f32 to vector<32x20xf32>
    %11 = arith.subf %9, %10 : vector<32x20xf32>
    %12 = arith.subf %3, %2 : vector<1x1xf32>
    %13 = vector.broadcast %12 : vector<1x1xf32> to vector<32x20xf32>
    %14 = arith.mulf %11, %13 : vector<32x20xf32>
    %15 = vector.broadcast %2 : vector<1x1xf32> to vector<32x20xf32>
    %16 = arith.addf %14, %15 : vector<32x20xf32>
    %17 = vector.broadcast %2 : vector<1x1xf32> to vector<32x20xf32>
    %18 = arith.maximumf %17, %16 : vector<32x20xf32>
    %cst_3 = arith.constant 0.000000e+00 : f32
    %19 = vector.broadcast %cst_3 : f32 to vector<32x20xf32>
    %20 = arith.subf %19, %18 : vector<32x20xf32>
    %21 = arith.mulf %18, %20 : vector<32x20xf32>
    %22 = math.log1p %21 : vector<32x20xf32>
    %cst_4 = arith.constant 0.000000e+00 : f32
    %23 = vector.broadcast %cst_4 : f32 to vector<32x20xf32>
    %24 = arith.subf %23, %22 : vector<32x20xf32>
    %cst_5 = arith.constant 5.000000e+00 : f32
    %25 = vector.broadcast %cst_5 : f32 to vector<32x20xf32>
    %26 = arith.cmpf olt, %24, %25 : vector<32x20xf32>
    %cst_6 = arith.constant 2.500000e+00 : f32
    %27 = vector.broadcast %cst_6 : f32 to vector<32x20xf32>
    %28 = arith.subf %24, %27 : vector<32x20xf32>
    %29 = math.sqrt %24 : vector<32x20xf32>
    %cst_7 = arith.constant 3.000000e+00 : f32
    %30 = vector.broadcast %cst_7 : f32 to vector<32x20xf32>
    %31 = arith.subf %29, %30 : vector<32x20xf32>
    %32 = arith.select %26, %28, %31 : vector<32x20xi1>, vector<32x20xf32>
    %cst_8 = arith.constant 2.81022636E-8 : f32
    %cst_9 = arith.constant -2.00214257E-4 : f32
    %33 = vector.broadcast %cst_8 : f32 to vector<32x20xf32>
    %34 = vector.broadcast %cst_9 : f32 to vector<32x20xf32>
    %35 = arith.select %26, %33, %34 : vector<32x20xi1>, vector<32x20xf32>
    %cst_10 = arith.constant 3.43273939E-7 : f32
    %cst_11 = arith.constant 1.00950558E-4 : f32
    %36 = vector.broadcast %cst_10 : f32 to vector<32x20xf32>
    %37 = vector.broadcast %cst_11 : f32 to vector<32x20xf32>
    %38 = arith.select %26, %36, %37 : vector<32x20xi1>, vector<32x20xf32>
    %39 = arith.mulf %35, %32 : vector<32x20xf32>
    %40 = arith.addf %38, %39 : vector<32x20xf32>
    %cst_12 = arith.constant -3.5233877E-6 : f32
    %cst_13 = arith.constant 0.00134934322 : f32
    %41 = vector.broadcast %cst_12 : f32 to vector<32x20xf32>
    %42 = vector.broadcast %cst_13 : f32 to vector<32x20xf32>
    %43 = arith.select %26, %41, %42 : vector<32x20xi1>, vector<32x20xf32>
    %44 = arith.mulf %40, %32 : vector<32x20xf32>
    %45 = arith.addf %43, %44 : vector<32x20xf32>
    %cst_14 = arith.constant -4.39150654E-6 : f32
    %cst_15 = arith.constant -0.00367342844 : f32
    %46 = vector.broadcast %cst_14 : f32 to vector<32x20xf32>
    %47 = vector.broadcast %cst_15 : f32 to vector<32x20xf32>
    %48 = arith.select %26, %46, %47 : vector<32x20xi1>, vector<32x20xf32>
    %49 = arith.mulf %45, %32 : vector<32x20xf32>
    %50 = arith.addf %48, %49 : vector<32x20xf32>
    %cst_16 = arith.constant 2.1858087E-4 : f32
    %cst_17 = arith.constant 0.00573950773 : f32
    %51 = vector.broadcast %cst_16 : f32 to vector<32x20xf32>
    %52 = vector.broadcast %cst_17 : f32 to vector<32x20xf32>
    %53 = arith.select %26, %51, %52 : vector<32x20xi1>, vector<32x20xf32>
    %54 = arith.mulf %50, %32 : vector<32x20xf32>
    %55 = arith.addf %53, %54 : vector<32x20xf32>
    %cst_18 = arith.constant -0.00125372503 : f32
    %cst_19 = arith.constant -0.0076224613 : f32
    %56 = vector.broadcast %cst_18 : f32 to vector<32x20xf32>
    %57 = vector.broadcast %cst_19 : f32 to vector<32x20xf32>
    %58 = arith.select %26, %56, %57 : vector<32x20xi1>, vector<32x20xf32>
    %59 = arith.mulf %55, %32 : vector<32x20xf32>
    %60 = arith.addf %58, %59 : vector<32x20xf32>
    %cst_20 = arith.constant -0.00417768164 : f32
    %cst_21 = arith.constant 0.00943887047 : f32
    %61 = vector.broadcast %cst_20 : f32 to vector<32x20xf32>
    %62 = vector.broadcast %cst_21 : f32 to vector<32x20xf32>
    %63 = arith.select %26, %61, %62 : vector<32x20xi1>, vector<32x20xf32>
    %64 = arith.mulf %60, %32 : vector<32x20xf32>
    %65 = arith.addf %63, %64 : vector<32x20xf32>
    %cst_22 = arith.constant 0.246640727 : f32
    %cst_23 = arith.constant 1.00167406 : f32
    %66 = vector.broadcast %cst_22 : f32 to vector<32x20xf32>
    %67 = vector.broadcast %cst_23 : f32 to vector<32x20xf32>
    %68 = arith.select %26, %66, %67 : vector<32x20xi1>, vector<32x20xf32>
    %69 = arith.mulf %65, %32 : vector<32x20xf32>
    %70 = arith.addf %68, %69 : vector<32x20xf32>
    %cst_24 = arith.constant 1.50140941 : f32
    %cst_25 = arith.constant 2.83297682 : f32
    %71 = vector.broadcast %cst_24 : f32 to vector<32x20xf32>
    %72 = vector.broadcast %cst_25 : f32 to vector<32x20xf32>
    %73 = arith.select %26, %71, %72 : vector<32x20xi1>, vector<32x20xf32>
    %74 = arith.mulf %70, %32 : vector<32x20xf32>
    %75 = arith.addf %73, %74 : vector<32x20xf32>
    %76 = math.absf %18 : vector<32x20xf32>
    %cst_26 = arith.constant 1.000000e+00 : f32
    %77 = vector.broadcast %cst_26 : f32 to vector<32x20xf32>
    %78 = arith.cmpf oeq, %76, %77 : vector<32x20xf32>
    %cst_27 = arith.constant 0x7F800000 : f32
    %79 = vector.broadcast %cst_27 : f32 to vector<32x20xf32>
    %80 = arith.mulf %79, %18 : vector<32x20xf32>
    %81 = arith.mulf %75, %18 : vector<32x20xf32>
    %82 = arith.select %78, %80, %81 : vector<32x20xi1>, vector<32x20xf32>
    %cst_28 = arith.constant 1.41421354 : f32
    %83 = vector.broadcast %cst_28 : f32 to vector<32x20xf32>
    %84 = arith.mulf %83, %82 : vector<32x20xf32>
    %85 = tpu.iota {dimensions = array<i32: 0>} : vector<20x42xi32>
    %c0_29 = arith.constant 0 : index
    %c0_30 = arith.constant 0 : index
    %86 = vector.load %arg2[%c0_29, %c0_30] : memref<1x42xi32, #tpu.memory_space<vmem>>, vector<1x42xi32>
    %87 = vector.broadcast %86 : vector<1x42xi32> to vector<20x42xi32>
    %88 = arith.cmpi eq, %85, %87 : vector<20x42xi32>
    %cst_31 = arith.constant 0.707106769 : f32
    %cst_32 = arith.constant 0.000000e+00 : f32
    %89 = vector.broadcast %cst_31 : f32 to vector<20x42xf32>
    %90 = vector.broadcast %cst_32 : f32 to vector<20x42xf32>
    %91 = arith.select %88, %89, %90 : vector<20x42xi1>, vector<20x42xf32>
    %cst_33 = arith.constant dense<0.000000e+00> : vector<32x42xf32>
    %92 = tpu.matmul %84, %91, %cst_33 {dimension_numbers = #tpu.dot_dimension_numbers<[1], [0], [0], [1], [0, 0, 1, 1], [], []>} : vector<32x20xf32>, vector<20x42xf32>, vector<32x42xf32> -> vector<32x42xf32>
    %93 = vector.extract_strided_slice %92 {offsets = [0, 0], sizes = [32, 40], strides = [1, 1]} : vector<32x42xf32> to vector<32x40xf32>
    %c0_34 = arith.constant 0 : index
    %c0_35 = arith.constant 0 : index
    %94 = vector.load %arg3[%c0_34, %c0_35] : memref<32x84xf32, #tpu.memory_space<vmem>>, vector<32x40xf32>
    tpu.vector_store %arg3[%c0_34, %c0_35], %93 {strides = array<i32>} : memref<32x84xf32, #tpu.memory_space<vmem>>, vector<32x40xf32>,
    %c0_36 = arith.constant 0 : index
    %c40 = arith.constant 40 : index
    %95 = vector.load %arg3[%c0_36, %c40] : memref<32x84xf32, #tpu.memory_space<vmem>>, vector<32x40xf32>
    tpu.vector_store %arg3[%c0_36, %c40], %93 {strides = array<i32>} : memref<32x84xf32, #tpu.memory_space<vmem>>, vector<32x40xf32>,
    %96 = vector.extract_strided_slice %92 {offsets = [0, 40], sizes = [32, 2], strides = [1, 1]} : vector<32x42xf32> to vector<32x2xf32>
    %c0_37 = arith.constant 0 : index
    %c80 = arith.constant 80 : index
    %97 = vector.load %arg3[%c0_37, %c80] : memref<32x84xf32, #tpu.memory_space<vmem>>, vector<32x2xf32>
    tpu.vector_store %arg3[%c0_37, %c80], %96 {strides = array<i32>} : memref<32x84xf32, #tpu.memory_space<vmem>>, vector<32x2xf32>,
    %c0_38 = arith.constant 0 : index
    %c82 = arith.constant 82 : index
    %98 = vector.load %arg3[%c0_38, %c82] : memref<32x84xf32, #tpu.memory_space<vmem>>, vector<32x2xf32>
    tpu.vector_store %arg3[%c0_38, %c82], %96 {strides = array<i32>} : memref<32x84xf32, #tpu.memory_space<vmem>>, vector<32x2xf32>,
    return
  }
  func.func @transform_0(%arg0: i32, %arg1: memref<1xi32, #tpu.memory_space<smem>>) -> (i32, i32) {
    %c0_i32 = arith.constant 0 : i32
    %c0_i32_0 = arith.constant 0 : i32
    %c0_i32_1 = arith.constant 0 : i32
    return %c0_i32, %c0_i32_0 : i32, i32
  }
  func.func @transform_1(%arg0: i32, %arg1: memref<1xi32, #tpu.memory_space<smem>>) -> (i32, i32) {
    %c0_i32 = arith.constant 0 : i32
    %c0_i32_0 = arith.constant 0 : i32
    return %arg0, %c0_i32 : i32, i32
  }
}

module attributes {stable_mosaic.version = 11 : i64} {
  func.func @_slab_kernel(%arg0: i32, %arg1: memref<1xi32, #tpu.memory_space<smem>>, %arg2: memref<1x42xi32, #tpu.memory_space<vmem>>, %arg3: memref<32x20xf32, #tpu.memory_space<vmem>>, %arg4: memref<32x84xf32, #tpu.memory_space<vmem>>) attributes {dimension_semantics = [#tpu.dimension_semantics<parallel>], iteration_bounds = array<i64: 1>, scalar_prefetch = 1 : i64, scratch_operands = 0 : i64, tpu.core_type = #tpu.core_type<tc>, window_params = [{pipeline_mode = #tpu.pipeline_mode<synchronous>, transform_indices = @transform_0, window_bounds = array<i64: 1, 42>}, {transform_indices = @transform_1, window_bounds = array<i64: 32, 20>}, {transform_indices = @transform_2, window_bounds = array<i64: 32, 84>}]} {
    %c0 = arith.constant 0 : index
    %c0_0 = arith.constant 0 : index
    %0 = vector.load %arg3[%c0, %c0_0] : memref<32x20xf32, #tpu.memory_space<vmem>>, vector<32x20xf32>
    %1 = tpu.iota {dimensions = array<i32: 0>} : vector<20x42xi32>
    %c0_1 = arith.constant 0 : index
    %c0_2 = arith.constant 0 : index
    %2 = vector.load %arg2[%c0_1, %c0_2] : memref<1x42xi32, #tpu.memory_space<vmem>>, vector<1x42xi32>
    %3 = vector.broadcast %2 : vector<1x42xi32> to vector<20x42xi32>
    %4 = arith.cmpi eq, %1, %3 : vector<20x42xi32>
    %cst = arith.constant 0.707106769 : f32
    %cst_3 = arith.constant 0.000000e+00 : f32
    %5 = vector.broadcast %cst : f32 to vector<20x42xf32>
    %6 = vector.broadcast %cst_3 : f32 to vector<20x42xf32>
    %7 = arith.select %4, %5, %6 : vector<20x42xi1>, vector<20x42xf32>
    %cst_4 = arith.constant dense<0.000000e+00> : vector<32x42xf32>
    %8 = tpu.matmul %0, %7, %cst_4 {dimension_numbers = #tpu.dot_dimension_numbers<[1], [0], [0], [1], [0, 0, 1, 1], [], []>} : vector<32x20xf32>, vector<20x42xf32>, vector<32x42xf32> -> vector<32x42xf32>
    %9 = vector.extract_strided_slice %8 {offsets = [0, 0], sizes = [32, 40], strides = [1, 1]} : vector<32x42xf32> to vector<32x40xf32>
    %c0_5 = arith.constant 0 : index
    %c0_6 = arith.constant 0 : index
    %10 = vector.load %arg4[%c0_5, %c0_6] : memref<32x84xf32, #tpu.memory_space<vmem>>, vector<32x40xf32>
    tpu.vector_store %arg4[%c0_5, %c0_6], %9 {strides = array<i32>} : memref<32x84xf32, #tpu.memory_space<vmem>>, vector<32x40xf32>,
    %c0_7 = arith.constant 0 : index
    %c40 = arith.constant 40 : index
    %11 = vector.load %arg4[%c0_7, %c40] : memref<32x84xf32, #tpu.memory_space<vmem>>, vector<32x40xf32>
    tpu.vector_store %arg4[%c0_7, %c40], %9 {strides = array<i32>} : memref<32x84xf32, #tpu.memory_space<vmem>>, vector<32x40xf32>,
    %12 = vector.extract_strided_slice %8 {offsets = [0, 40], sizes = [32, 2], strides = [1, 1]} : vector<32x42xf32> to vector<32x2xf32>
    %c0_8 = arith.constant 0 : index
    %c80 = arith.constant 80 : index
    %13 = vector.load %arg4[%c0_8, %c80] : memref<32x84xf32, #tpu.memory_space<vmem>>, vector<32x2xf32>
    tpu.vector_store %arg4[%c0_8, %c80], %12 {strides = array<i32>} : memref<32x84xf32, #tpu.memory_space<vmem>>, vector<32x2xf32>,
    %c0_9 = arith.constant 0 : index
    %c82 = arith.constant 82 : index
    %14 = vector.load %arg4[%c0_9, %c82] : memref<32x84xf32, #tpu.memory_space<vmem>>, vector<32x2xf32>
    tpu.vector_store %arg4[%c0_9, %c82], %12 {strides = array<i32>} : memref<32x84xf32, #tpu.memory_space<vmem>>, vector<32x2xf32>,
    return
  }
  func.func @transform_0(%arg0: i32, %arg1: memref<1xi32, #tpu.memory_space<smem>>) -> (i32, i32) {
    %c0_i32 = arith.constant 0 : i32
    %c0_i32_0 = arith.constant 0 : i32
    %c0_i32_1 = arith.constant 0 : i32
    return %c0_i32, %c0_i32_0 : i32, i32
  }
  func.func @transform_1(%arg0: i32, %arg1: memref<1xi32, #tpu.memory_space<smem>>) -> (i32, i32) {
    %c0_i32 = arith.constant 0 : i32
    %c0_i32_0 = arith.constant 0 : i32
    return %arg0, %c0_i32 : i32, i32
  }
  func.func @transform_2(%arg0: i32, %arg1: memref<1xi32, #tpu.memory_space<smem>>) -> (i32, i32) {
    %c0_i32 = arith.constant 0 : i32
    %c0_i32_0 = arith.constant 0 : i32
    return %arg0, %c0_i32 : i32, i32
  }
}

</mosaic_0001>

<llo_original>
// kernel: tpu_custom_call.1
$region0: #{tpu_custom_call.1}
  #allocation0 [shape = 'u32[]', space=smem, size = 0x4, offset = 0x4, fixed_abs, tag = 'smem constant byte address 0x4 - core index']
  #allocation1 [shape = 'u32[72,128]{1,0:T(1,128)}', space=vmem, size = 0x9000, scoped, tag = 'internal scratch']
  #allocation2 [shape = 's32[1]{0}', space=sflag, size = 0x4, scoped, tag = 'scoped memory for tpu_custom_call.1']
  #allocation3 [shape = 's32[1]{0:T(128)S(6)}', space=smem, size = 0x200, scoped, tag = 'prefetched SMEM operand 0']
  %s0 = inlined_call_operand.<no memory space> [shape: s32[1], index: 0, kind: input, shape index: {}]
  %s1 = inlined_call_operand.vmem [shape: s32[1,42], index: 1, kind: input, shape index: {}]
  %s2 = inlined_call_operand.hbm [shape: f32[32,84], index: 2, kind: output, shape index: {}]
  %s3 = sld [smem:[#allocation0]]
  $region14: #{tpu_custom_call.1} parent=0
    _
  %s5 = ssub.s32 1, %s3
  %s6 = scalar_select 0, %s5, %s3
  %7 = sst [smem:[#allocation3]] %s0
  $region1: #{tpu_custom_call.1} parent=0
    #allocation4 [shape = 'u8[16384]{0}', space=vmem, size = 0x4000, scoped, tag = 'output window, operand 0, single buffered']
    #allocation5 [shape = 's32[1]{0}', space=sflag, size = 0x4, scoped, tag = 'scoped memory for tpu_custom_call.1']
    %8 = vsyncpa [#allocation5], 0
    // Predicated region
    $region2: #{tpu_custom_call.1} parent=1 // pred_check
      _
    $region3: #{tpu_custom_call.1} parent=1 // pred_check_branch
      %10 = sbr.rel (0) target = $region5
    $region4: #{tpu_custom_call.1} parent=1 // pred_region
      _
    $region5: #{tpu_custom_call.1} parent=1 // pred_fallthru
      _
    %s11 = sld [smem:[#allocation3]]
    %s12 = sadd.s32 %s11, 0
    %v13 = vlaneseq
    %v14 = vstv %s12
    %v15 = vxor.u32 %v14, %v14
    %v16 = vxor.u32 %v15, 466688986
    %v17 = vadd.s32 %v13, %v14
    %v18 = vadd.s32 %v17, %v17
    %v19 = vshll.u32 %v17, 13
    %v20 = vshrl.u32 %v17, 19
    %v21 = vor.u32 %v19, %v20
    %v22 = vxor.u32 %v18, %v21
    %v23 = vadd.s32 %v18, %v22
    %v24 = vshll.u32 %v22, 15
    %v25 = vshrl.u32 %v22, 17
    %v26 = vor.u32 %v24, %v25
    %v27 = vxor.u32 %v23, %v26
    %v28 = vadd.s32 %v23, %v27
    %v29 = vshll.u32 %v27, 26
    %v30 = vshrl.u32 %v27, 6
    %v31 = vor.u32 %v29, %v30
    %v32 = vxor.u32 %v28, %v31
    %v33 = vadd.s32 %v28, %v32
    %v34 = vshll.u32 %v32, 6
    %v35 = vshrl.u32 %v32, 26
    %v36 = vor.u32 %v34, %v35
    %v37 = vxor.u32 %v33, %v36
    %v38 = vadd.s32 %v33, %v14
    %v39 = vadd.s32 %v37, %v16
    %v40 = vadd.s32 %v39, 1
    %v41 = vadd.s32 %v38, %v40
    %v42 = vshll.u32 %v40, 17
    %v43 = vshrl.u32 %v40, 15
    %v44 = vor.u32 %v42, %v43
    %v45 = vxor.u32 %v41, %v44
    %v46 = vadd.s32 %v41, %v45
    %v47 = vshll.u32 %v45, 29
    %v48 = vshrl.u32 %v45, 3
    %v49 = vor.u32 %v47, %v48
    %v50 = vxor.u32 %v46, %v49
    %v51 = vadd.s32 %v46, %v50
    %v52 = vshll.u32 %v50, 16
    %v53 = vshrl.u32 %v50, 16
    %v54 = vor.u32 %v52, %v53
    %v55 = vxor.u32 %v51, %v54
    %v56 = vadd.s32 %v51, %v55
    %v57 = vshll.u32 %v55, 24
    %v58 = vshrl.u32 %v55, 8
    %v59 = vor.u32 %v57, %v58
    %v60 = vxor.u32 %v56, %v59
    %v61 = vadd.s32 %v56, %v16
    %v62 = vadd.s32 %v60, %v14
    %v63 = vadd.s32 %v62, 2
    %v64 = vadd.s32 %v61, %v63
    %v65 = vshll.u32 %v63, 13
    %v66 = vshrl.u32 %v63, 19
    %v67 = vor.u32 %v65, %v66
    %v68 = vxor.u32 %v64, %v67
    %v69 = vadd.s32 %v64, %v68
    %v70 = vshll.u32 %v68, 15
    %v71 = vshrl.u32 %v68, 17
    %v72 = vor.u32 %v70, %v71
    %v73 = vxor.u32 %v69, %v72
    %v74 = vadd.s32 %v69, %v73
    %v75 = vshll.u32 %v73, 26
    %v76 = vshrl.u32 %v73, 6
    %v77 = vor.u32 %v75, %v76
    %v78 = vxor.u32 %v74, %v77
    %v79 = vadd.s32 %v74, %v78
    %v80 = vshll.u32 %v78, 6
    %v81 = vshrl.u32 %v78, 26
    %v82 = vor.u32 %v80, %v81
    %v83 = vxor.u32 %v79, %v82
    %v84 = vadd.s32 %v79, %v14
    %v85 = vadd.s32 %v83, %v14
    %v86 = vadd.s32 %v85, 3
    %v87 = vadd.s32 %v84, %v86
    %v88 = vshll.u32 %v86, 17
    %v89 = vshrl.u32 %v86, 15
    %v90 = vor.u32 %v88, %v89
    %v91 = vxor.u32 %v87, %v90
    %v92 = vadd.s32 %v87, %v91
    %v93 = vshll.u32 %v91, 29
    %v94 = vshrl.u32 %v91, 3
    %v95 = vor.u32 %v93, %v94
    %v96 = vxor.u32 %v92, %v95
    %v97 = vadd.s32 %v92, %v96
    %v98 = vshll.u32 %v96, 16
    %v99 = vshrl.u32 %v96, 16
    %v100 = vor.u32 %v98, %v99
    %v101 = vxor.u32 %v97, %v100
    %v102 = vadd.s32 %v97, %v101
    %v103 = vshll.u32 %v101, 24
    %v104 = vshrl.u32 %v101, 8
    %v105 = vor.u32 %v103, %v104
    %v106 = vxor.u32 %v102, %v105
    %v107 = vadd.s32 %v102, %v14
    %v108 = vadd.s32 %v106, %v16
    %v109 = vadd.s32 %v108, 4
    %v110 = vadd.s32 %v107, %v109
    %v111 = vshll.u32 %v109, 13
    %v112 = vshrl.u32 %v109, 19
    %v113 = vor.u32 %v111, %v112
    %v114 = vxor.u32 %v110, %v113
    %v115 = vadd.s32 %v110, %v114
    %v116 = vshll.u32 %v114, 15
    %v117 = vshrl.u32 %v114, 17
    %v118 = vor.u32 %v116, %v117
    %v119 = vxor.u32 %v115, %v118
    %v120 = vadd.s32 %v115, %v119
    %v121 = vshll.u32 %v119, 26
    %v122 = vshrl.u32 %v119, 6
    %v123 = vor.u32 %v121, %v122
    %v124 = vxor.u32 %v120, %v123
    %v125 = vadd.s32 %v120, %v124
    %v126 = vshll.u32 %v124, 6
    %v127 = vshrl.u32 %v124, 26
    %v128 = vor.u32 %v126, %v127
    %v129 = vxor.u32 %v125, %v128
    %v130 = vadd.s32 %v125, %v16
    %v131 = vadd.s32 %v129, %v14
    %v132 = vadd.s32 %v131, 5
    %v133 = vxor.u32 %v130, %v132
    %134 = set.rngseed %v133
    %v135 = vrng
    %v136 = vrng
    %v137 = vrng
    %v138 = vrng
    %v139 = vshrl.u32 %v135, 9
    %v140 = vshrl.u32 %v136, 9
    %v141 = vshrl.u32 %v137, 9
    %v142 = vshrl.u32 %v138, 9
    %v143 = vor.u32 %v139, 1065353216
    %v144 = vor.u32 %v140, 1065353216
    %v145 = vor.u32 %v141, 1065353216
    %v146 = vor.u32 %v142, 1065353216
    %v151 = vsub.f32 %v143, 1.0
    %v152 = vsub.f32 %v144, 1.0
    %v153 = vsub.f32 %v145, 1.0
    %v154 = vsub.f32 %v146, 1.0
    %v155 = vmul.f32 %v151, 2.0
    %v156 = vmul.f32 %v152, 2.0
    %v157 = vmul.f32 %v153, 2.0
    %v158 = vmul.f32 %v154, 2.0
    %v159 = vadd.f32 %v155, -0.99999994
    %v160 = vadd.f32 %v156, -0.99999994
    %v161 = vadd.f32 %v157, -0.99999994
    %v162 = vadd.f32 %v158, -0.99999994
    %v163 = vmax.f32 %v159, -0.99999994
    %v164 = vmax.f32 %v160, -0.99999994
    %v165 = vmax.f32 %v161, -0.99999994
    %v166 = vmax.f32 %v162, -0.99999994
    %v167 = vsub.f32 0.0, %v163
    %v168 = vsub.f32 0.0, %v164
    %v169 = vsub.f32 0.0, %v165
    %v170 = vsub.f32 0.0, %v166
    %v171 = vmul.f32 %v163, %v167
    %v172 = vmul.f32 %v164, %v168
    %v173 = vmul.f32 %v165, %v169
    %v174 = vmul.f32 %v166, %v170
    %v175 = vadd.f32 %v171, 1.0
    %v176 = vlog2.pop %v175
    %v177 = vmul.f32 %v176, 0.6931472
    %v178 = vmul.f32 -0.5, %v171
    %v179 = vadd.f32 %v178, 1.0
    %v180 = vmul.f32 %v179, %v171
    %v181 = vand.u32 2147483647, %v171
    %vm182 = vcmp.lt.f32.partialorder %v181, 0.0004427343
    %v183 = vsel %vm182, %v180, %v177
    %v184 = vadd.f32 %v172, 1.0
    %v185 = vlog2.pop %v184
    %v186 = vmul.f32 %v185, 0.6931472
    %v187 = vmul.f32 -0.5, %v172
    %v188 = vadd.f32 %v187, 1.0
    %v189 = vmul.f32 %v188, %v172
    %v190 = vand.u32 2147483647, %v172
    %vm191 = vcmp.lt.f32.partialorder %v190, 0.0004427343
    %v192 = vsel %vm191, %v189, %v186
    %v193 = vadd.f32 %v173, 1.0
    %v194 = vlog2.pop %v193
    %v195 = vmul.f32 %v194, 0.6931472
    %v196 = vmul.f32 -0.5, %v173
    %v197 = vadd.f32 %v196, 1.0
    %v198 = vmul.f32 %v197, %v173
    %v199 = vand.u32 2147483647, %v173
    %vm200 = vcmp.lt.f32.partialorder %v199, 0.0004427343
    %v201 = vsel %vm200, %v198, %v195
    %v202 = vadd.f32 %v174, 1.0
    %v203 = vlog2.pop %v202
    %v204 = vmul.f32 %v203, 0.6931472
    %v205 = vmul.f32 -0.5, %v174
    %v206 = vadd.f32 %v205, 1.0
    %v207 = vmul.f32 %v206, %v174
    %v208 = vand.u32 2147483647, %v174
    %vm209 = vcmp.lt.f32.partialorder %v208, 0.0004427343
    %v210 = vsel %vm209, %v207, %v204
    %v211 = vsub.f32 0.0, %v183
    %v212 = vsub.f32 0.0, %v192
    %v213 = vsub.f32 0.0, %v201
    %v214 = vsub.f32 0.0, %v210
    %vm215 = vcmp.lt.f32.partialorder %v211, 5.0
    %vm216 = vcmp.lt.f32.partialorder %v212, 5.0
    %vm217 = vcmp.lt.f32.partialorder %v213, 5.0
    %vm218 = vcmp.lt.f32.partialorder %v214, 5.0
    %v219 = vsub.f32 %v211, 2.5
    %v220 = vsub.f32 %v212, 2.5
    %v221 = vsub.f32 %v213, 2.5
    %v222 = vsub.f32 %v214, 2.5
    %v223 = vrsqrt.pop %v211
    %v224 = vmul.f32 %v223, %v211
    %v225 = vmul.f32 %v224, %v223
    %v226 = vmul.f32 0.5, %v225
    %v227 = vsub.f32 1.5, %v226
    %v228 = vmul.f32 %v223, %v227
    %v229 = vmul.f32 %v211, %v228
    %vm230 = vcmp.eq.f32.partialorder %v211, inf
    %v231 = vsel %vm230, %v211, %v229
    %vm232 = vcmp.eq.f32.partialorder %v211, 0.0
    %v233 = vand.u32 %v211, 2147483648
    %v234 = vsel %vm232, %v233, %v231
    %v235 = vrsqrt.pop %v212
    %v236 = vmul.f32 %v235, %v212
    %v237 = vmul.f32 %v236, %v235
    %v238 = vmul.f32 0.5, %v237
    %v239 = vsub.f32 1.5, %v238
    %v240 = vmul.f32 %v235, %v239
    %v241 = vmul.f32 %v212, %v240
    %vm242 = vcmp.eq.f32.partialorder %v212, inf
    %v243 = vsel %vm242, %v212, %v241
    %vm244 = vcmp.eq.f32.partialorder %v212, 0.0
    %v245 = vand.u32 %v212, 2147483648
    %v246 = vsel %vm244, %v245, %v243
    %v247 = vrsqrt.pop %v213
    %v248 = vmul.f32 %v247, %v213
    %v249 = vmul.f32 %v248, %v247
    %v250 = vmul.f32 0.5, %v249
    %v251 = vsub.f32 1.5, %v250
    %v252 = vmul.f32 %v247, %v251
    %v253 = vmul.f32 %v213, %v252
    %vm254 = vcmp.eq.f32.partialorder %v213, inf
    %v255 = vsel %vm254, %v213, %v253
    %vm256 = vcmp.eq.f32.partialorder %v213, 0.0
    %v257 = vand.u32 %v213, 2147483648
    %v258 = vsel %vm256, %v257, %v255
    %v259 = vrsqrt.pop %v214
    %v260 = vmul.f32 %v259, %v214
    %v261 = vmul.f32 %v260, %v259
    %v262 = vmul.f32 0.5, %v261
    %v263 = vsub.f32 1.5, %v262
    %v264 = vmul.f32 %v259, %v263
    %v265 = vmul.f32 %v214, %v264
    %vm266 = vcmp.eq.f32.partialorder %v214, inf
    %v267 = vsel %vm266, %v214, %v265
    %vm268 = vcmp.eq.f32.partialorder %v214, 0.0
    %v269 = vand.u32 %v214, 2147483648
    %v270 = vsel %vm268, %v269, %v267
    %v271 = vsub.f32 %v234, 3.0
    %v272 = vsub.f32 %v246, 3.0
    %v273 = vsub.f32 %v258, 3.0
    %v274 = vsub.f32 %v270, 3.0
    %v275 = vsel %vm215, %v219, %v271
    %v276 = vsel %vm216, %v220, %v272
    %v277 = vsel %vm217, %v221, %v273
    %v278 = vsel %vm218, %v222, %v274
    %v279 = vsel %vm215, 2.8102264e-08, -0.00020021426
    %v280 = vsel %vm216, 2.8102264e-08, -0.00020021426
    %v281 = vsel %vm217, 2.8102264e-08, -0.00020021426
    %v282 = vsel %vm218, 2.8102264e-08, -0.00020021426
    %v283 = vsel %vm215, 3.4327394e-07, 0.00010095056
    %v284 = vsel %vm216, 3.4327394e-07, 0.00010095056
    %v285 = vsel %vm217, 3.4327394e-07, 0.00010095056
    %v286 = vsel %vm218, 3.4327394e-07, 0.00010095056
    %v287 = vmul.f32 %v279, %v275
    %v288 = vmul.f32 %v280, %v276
    %v289 = vmul.f32 %v281, %v277
    %v290 = vmul.f32 %v282, %v278
    %v291 = vadd.f32 %v283, %v287
    %v292 = vadd.f32 %v284, %v288
    %v293 = vadd.f32 %v285, %v289
    %v294 = vadd.f32 %v286, %v290
    %v295 = vsel %vm215, -3.5233877e-06, 0.0013493432
    %v296 = vsel %vm216, -3.5233877e-06, 0.0013493432
    %v297 = vsel %vm217, -3.5233877e-06, 0.0013493432
    %v298 = vsel %vm218, -3.5233877e-06, 0.0013493432
    %v299 = vmul.f32 %v291, %v275
    %v300 = vmul.f32 %v292, %v276
    %v301 = vmul.f32 %v293, %v277
    %v302 = vmul.f32 %v294, %v278
    %v303 = vadd.f32 %v295, %v299
    %v304 = vadd.f32 %v296, %v300
    %v305 = vadd.f32 %v297, %v301
    %v306 = vadd.f32 %v298, %v302
    %v307 = vsel %vm215, -4.3915065e-06, -0.0036734284
    %v308 = vsel %vm216, -4.3915065e-06, -0.0036734284
    %v309 = vsel %vm217, -4.3915065e-06, -0.0036734284
    %v310 = vsel %vm218, -4.3915065e-06, -0.0036734284
    %v311 = vmul.f32 %v303, %v275
    %v312 = vmul.f32 %v304, %v276
    %v313 = vmul.f32 %v305, %v277
    %v314 = vmul.f32 %v306, %v278
    %v315 = vadd.f32 %v307, %v311
    %v316 = vadd.f32 %v308, %v312
    %v317 = vadd.f32 %v309, %v313
    %v318 = vadd.f32 %v310, %v314
    %v319 = vsel %vm215, 0.00021858087, 0.0057395077
    %v320 = vsel %vm216, 0.00021858087, 0.0057395077
    %v321 = vsel %vm217, 0.00021858087, 0.0057395077
    %v322 = vsel %vm218, 0.00021858087, 0.0057395077
    %v323 = vmul.f32 %v315, %v275
    %v324 = vmul.f32 %v316, %v276
    %v325 = vmul.f32 %v317, %v277
    %v326 = vmul.f32 %v318, %v278
    %v327 = vadd.f32 %v319, %v323
    %v328 = vadd.f32 %v320, %v324
    %v329 = vadd.f32 %v321, %v325
    %v330 = vadd.f32 %v322, %v326
    %v331 = vsel %vm215, -0.001253725, -0.0076224613
    %v332 = vsel %vm216, -0.001253725, -0.0076224613
    %v333 = vsel %vm217, -0.001253725, -0.0076224613
    %v334 = vsel %vm218, -0.001253725, -0.0076224613
    %v335 = vmul.f32 %v327, %v275
    %v336 = vmul.f32 %v328, %v276
    %v337 = vmul.f32 %v329, %v277
    %v338 = vmul.f32 %v330, %v278
    %v339 = vadd.f32 %v331, %v335
    %v340 = vadd.f32 %v332, %v336
    %v341 = vadd.f32 %v333, %v337
    %v342 = vadd.f32 %v334, %v338
    %v343 = vsel %vm215, -0.0041776816, 0.0094388705
    %v344 = vsel %vm216, -0.0041776816, 0.0094388705
    %v345 = vsel %vm217, -0.0041776816, 0.0094388705
    %v346 = vsel %vm218, -0.0041776816, 0.0094388705
    %v347 = vmul.f32 %v339, %v275
    %v348 = vmul.f32 %v340, %v276
    %v349 = vmul.f32 %v341, %v277
    %v350 = vmul.f32 %v342, %v278
    %v351 = vadd.f32 %v343, %v347
    %v352 = vadd.f32 %v344, %v348
    %v353 = vadd.f32 %v345, %v349
    %v354 = vadd.f32 %v346, %v350
    %v355 = vsel %vm215, 0.24664073, 1.001674
    %v356 = vsel %vm216, 0.24664073, 1.001674
    %v357 = vsel %vm217, 0.24664073, 1.001674
    %v358 = vsel %vm218, 0.24664073, 1.001674
    %v359 = vmul.f32 %v351, %v275
    %v360 = vmul.f32 %v352, %v276
    %v361 = vmul.f32 %v353, %v277
    %v362 = vmul.f32 %v354, %v278
    %v363 = vadd.f32 %v355, %v359
    %v364 = vadd.f32 %v356, %v360
    %v365 = vadd.f32 %v357, %v361
    %v366 = vadd.f32 %v358, %v362
    %v367 = vsel %vm215, 1.5014094, 2.8329768
    %v368 = vsel %vm216, 1.5014094, 2.8329768
    %v369 = vsel %vm217, 1.5014094, 2.8329768
    %v370 = vsel %vm218, 1.5014094, 2.8329768
    %v371 = vmul.f32 %v363, %v275
    %v372 = vmul.f32 %v364, %v276
    %v373 = vmul.f32 %v365, %v277
    %v374 = vmul.f32 %v366, %v278
    %v375 = vadd.f32 %v367, %v371
    %v376 = vadd.f32 %v368, %v372
    %v377 = vadd.f32 %v369, %v373
    %v378 = vadd.f32 %v370, %v374
    %v379 = vand.u32 2147483647, %v163
    %v380 = vand.u32 2147483647, %v164
    %v381 = vand.u32 2147483647, %v165
    %v382 = vand.u32 2147483647, %v166
    %vm383 = vcmp.eq.f32.partialorder %v379, 1.0
    %vm384 = vcmp.eq.f32.partialorder %v380, 1.0
    %vm385 = vcmp.eq.f32.partialorder %v381, 1.0
    %vm386 = vcmp.eq.f32.partialorder %v382, 1.0
    %v387 = vmul.f32 %v163, inf
    %v388 = vmul.f32 %v164, inf
    %v389 = vmul.f32 %v165, inf
    %v390 = vmul.f32 %v166, inf
    %v391 = vmul.f32 %v375, %v163
    %v392 = vmul.f32 %v376, %v164
    %v393 = vmul.f32 %v377, %v165
    %v394 = vmul.f32 %v378, %v166
    %v395 = vsel %vm383, %v387, %v391
    %v396 = vsel %vm384, %v388, %v392
    %v397 = vsel %vm385, %v389, %v393
    %v398 = vsel %vm386, %v390, %v394
    %v399 = vmul.f32 %v395, 1.4142135
    %v400 = vmul.f32 %v396, 1.4142135
    %v401 = vmul.f32 %v397, 1.4142135
    %v402 = vmul.f32 %v398, 1.4142135
    %v403 = vlaneseq
    %v404 = vshrl.u32 %v403, 7
    %v405 = vadd.s32 %v404, 8
    %v406 = vadd.s32 %v404, 16
    %v407 = vld [vmem:[%s1] sm:$0x1]
    %v408 = vperm.slane %v407, 0
    %vm409 = vcmp.eq.s32.totalorder %v404, %v408
    %vm410 = vcmp.eq.s32.totalorder %v405, %v408
    %vm411 = vcmp.eq.s32.totalorder %v406, %v408
    %v412 = vsel %vm409, 0.70710677, 0.0
    %v413 = vsel %vm410, 0.70710677, 0.0
    %v414 = vsel %vm411, 0.70710677, 0.0
    %vm415 = vcmask 162816
    %v417 = vsel %vm415, %v399, 0
    %v420 = vsel %vm415, %v400, 0
    %v423 = vsel %vm415, %v401, 0
    %v426 = vsel %vm415, %v402, 0
    %vm428 = vcmask 1043456
    %v430 = vsel %vm428, %v414, 0
    %432 = vmatpush.msra.mxu0 0.0
    %433 = vmatpush.msra.mxu0 0.0
    %434 = vmatpush.msra.mxu0 0.0
    %435 = vmatpush.msra.mxu0 0.0
    %436 = vmatpush.msra.mxu0 0.0
    %437 = vmatpush.msra.mxu0 0.0
    %438 = vmatpush.msra.mxu0 0.0
    %439 = vmatpush.msra.mxu0 0.0
    %440 = vmatpush.msra.mxu0 0.0
    %441 = vmatpush.msra.mxu0 0.0
    %442 = vmatpush.msra.mxu0 0.0
    %443 = vmatpush.msra.mxu0 0.0
    %444 = vmatpush.msra.mxu0 0.0
    %445 = vmatpush.msra.mxu0 %v430
    %446 = vmatpush.msra.mxu0 %v413
    %447 = vmatpush.msra.mxu0 %v412
    %448 = vmatmul.f32.gmra.mxu0 %v417
    %v449 = vpop.f32.mrf.mxu0
    %v450 = vadd.f32 0.0, %v449
    %451 = vmatmul.f32.gmra.mxu0 %v420
    %v452 = vpop.f32.mrf.mxu0
    %v453 = vadd.f32 0.0, %v452
    %454 = vmatmul.f32.gmra.mxu0 %v423
    %v455 = vpop.f32.mrf.mxu0
    %v456 = vadd.f32 0.0, %v455
    %457 = vmatmul.f32.gmra.mxu0 %v426
    %v458 = vpop.f32.mrf.mxu0
    %v459 = vadd.f32 0.0, %v458
    %460 = vdwg.mxu0
    %vm461 = vcmask 326656
    %462 = vst.msk [vmem:[#allocation4] sm:$0xff] %vm461, %v450
    %463 = vst.msk [vmem:[#allocation4 + $0x8] sm:$0xff] %vm461, %v453
    %464 = vst.msk [vmem:[#allocation4 + $0x10] sm:$0xff] %vm461, %v456
    %465 = vst.msk [vmem:[#allocation4 + $0x18] sm:$0xff] %vm461, %v459
    %470 = vrot.lane.b32.xlu0 %v450, 40
    %v471 = vpop.permute.xlu0 %470
    %472 = vrot.lane.b32.xlu0 %v453, 40
    %v473 = vpop.permute.xlu0 %472
    %474 = vrot.lane.b32.xlu0 %v456, 40
    %v475 = vpop.permute.xlu0 %474
    %476 = vrot.lane.b32.xlu0 %v459, 40
    %v477 = vpop.permute.xlu0 %476
    %vm482 = vcmask 654656
    %483 = vst.msk [vmem:[#allocation4] sm:$0xff] %vm482, %v471
    %484 = vst.msk [vmem:[#allocation4 + $0x8] sm:$0xff] %vm482, %v473
    %485 = vst.msk [vmem:[#allocation4 + $0x10] sm:$0xff] %vm482, %v475
    %486 = vst.msk [vmem:[#allocation4 + $0x18] sm:$0xff] %vm482, %v477
    %vm487 = vcmask 671360
    %488 = vst.msk [vmem:[#allocation4] sm:$0xff] %vm487, %v471
    %489 = vst.msk [vmem:[#allocation4 + $0x8] sm:$0xff] %vm487, %v473
    %490 = vst.msk [vmem:[#allocation4 + $0x10] sm:$0xff] %vm487, %v475
    %491 = vst.msk [vmem:[#allocation4 + $0x18] sm:$0xff] %vm487, %v477
    %492 = vrot.lane.b32.xlu0 %v450, 42
    %v493 = vpop.permute.xlu0 %492
    %494 = vrot.lane.b32.xlu0 %v453, 42
    %v495 = vpop.permute.xlu0 %494
    %496 = vrot.lane.b32.xlu0 %v456, 42
    %v497 = vpop.permute.xlu0 %496
    %498 = vrot.lane.b32.xlu0 %v459, 42
    %v499 = vpop.permute.xlu0 %498
    %vm504 = vcmask 687760
    %505 = vst.msk [vmem:[#allocation4] sm:$0xff] %vm504, %v493
    %506 = vst.msk [vmem:[#allocation4 + $0x8] sm:$0xff] %vm504, %v495
    %507 = vst.msk [vmem:[#allocation4 + $0x10] sm:$0xff] %vm504, %v497
    %508 = vst.msk [vmem:[#allocation4 + $0x18] sm:$0xff] %vm504, %v499
    // Predicated region
    $region6: #{tpu_custom_call.1} parent=1 // pred_check
      _
    $region7: #{tpu_custom_call.1} parent=1 // pred_check_branch
      %510 = sbr.rel (0) target = $region9
    $region8: #{tpu_custom_call.1} parent=1 // pred_region
      %512 = vsyncadd [#allocation5], 0
      %s513 = sshll.u32 [#allocation4], 4
      %s514 = int_to_ptr.vmem [resolvable:$true] %s513
      %s515 = sshll.u32 %s2, 4
      %s516 = int_to_ptr.hbm [resolvable:$true] %s515
      %521 = dma.vmem_to_hbm [thread:$0]  %s514, 512, %s516, [#allocation5], 128, 128, 8
    $region9: #{tpu_custom_call.1} parent=1 // pred_fallthru
      _
    // Predicated region
    $region10: #{tpu_custom_call.1} parent=1 // pred_check
      _
    $region11: #{tpu_custom_call.1} parent=1 // pred_check_branch
      %523 = sbr.rel (0) target = $region13
    $region12: #{tpu_custom_call.1} parent=1 // pred_region
      %525 = dma.done [#allocation5], 512
    $region13: #{tpu_custom_call.1} parent=1 // pred_fallthru
      _
    %526 = vsyncpa [#allocation5], 1

// kernel: tpu_custom_call.1
$region0: #{tpu_custom_call.1}
  #allocation0 [shape = 'u32[]', space=smem, size = 0x4, offset = 0x4, fixed_abs, tag = 'smem constant byte address 0x4 - core index']
  #allocation1 [shape = 'u32[72,128]{1,0:T(1,128)}', space=vmem, size = 0x9000, scoped, tag = 'internal scratch']
  #allocation2 [shape = 's32[1]{0}', space=sflag, size = 0x4, scoped, tag = 'scoped memory for tpu_custom_call.1']
  #allocation3 [shape = 's32[1]{0:T(128)S(6)}', space=smem, size = 0x200, scoped, tag = 'prefetched SMEM operand 0']
  %s0 = inlined_call_operand.<no memory space> [shape: s32[1], index: 0, kind: input, shape index: {}]
  %s1 = inlined_call_operand.vmem [shape: s32[1,42], index: 1, kind: input, shape index: {}]
  %s2 = inlined_call_operand.vmem [shape: f32[32,20], index: 2, kind: input, shape index: {}]
  %s3 = inlined_call_operand.hbm [shape: f32[32,84], index: 3, kind: output, shape index: {}]
  %s4 = sld [smem:[#allocation0]]
  $region18: #{tpu_custom_call.1} parent=0
    _
  %s6 = ssub.s32 1, %s4
  %s7 = scalar_select 0, %s6, %s4
  %8 = sst [smem:[#allocation3]] %s0
  $region1: #{tpu_custom_call.1} parent=0
    #allocation4 [shape = 'u8[16384]{0}', space=vmem, size = 0x4000, scoped, tag = 'output window, operand 0, single buffered']
    #allocation5 [shape = 's32[1]{0}', space=sflag, size = 0x4, scoped, tag = 'scoped memory for tpu_custom_call.1']
    %9 = vsyncpa [#allocation5], 0
    // Predicated region
    $region2: #{tpu_custom_call.1} parent=1 // pred_check
      _
    $region3: #{tpu_custom_call.1} parent=1 // pred_check_branch
      %11 = sbr.rel (0) target = $region5
    $region4: #{tpu_custom_call.1} parent=1 // pred_region
      _
    $region5: #{tpu_custom_call.1} parent=1 // pred_fallthru
      _
    // Predicated region
    $region6: #{tpu_custom_call.1} parent=1 // pred_check
      _
    $region7: #{tpu_custom_call.1} parent=1 // pred_check_branch
      %13 = sbr.rel (0) target = $region9
    $region8: #{tpu_custom_call.1} parent=1 // pred_region
      _
    $region9: #{tpu_custom_call.1} parent=1 // pred_fallthru
      _
    %v14 = vld [vmem:[%s2] sm:$0xff]
    %v15 = vld [vmem:[%s2 + $0x8] sm:$0xff]
    %v16 = vld [vmem:[%s2 + $0x10] sm:$0xff]
    %v17 = vld [vmem:[%s2 + $0x18] sm:$0xff]
    %v18 = vlaneseq
    %v19 = vshrl.u32 %v18, 7
    %v20 = vadd.s32 %v19, 8
    %v21 = vadd.s32 %v19, 16
    %v22 = vld [vmem:[%s1] sm:$0x1]
    %v23 = vperm.slane %v22, 0
    %vm24 = vcmp.eq.s32.totalorder %v19, %v23
    %vm25 = vcmp.eq.s32.totalorder %v20, %v23
    %vm26 = vcmp.eq.s32.totalorder %v21, %v23
    %v27 = vsel %vm24, 0.70710677, 0.0
    %v28 = vsel %vm25, 0.70710677, 0.0
    %v29 = vsel %vm26, 0.70710677, 0.0
    %vm30 = vcmask 162816
    %v32 = vsel %vm30, %v14, 0
    %v35 = vsel %vm30, %v15, 0
    %v38 = vsel %vm30, %v16, 0
    %v41 = vsel %vm30, %v17, 0
    %vm43 = vcmask 1043456
    %v45 = vsel %vm43, %v29, 0
    %47 = vmatpush.msra.mxu0 0.0
    %48 = vmatpush.msra.mxu0 0.0
    %49 = vmatpush.msra.mxu0 0.0
    %50 = vmatpush.msra.mxu0 0.0
    %51 = vmatpush.msra.mxu0 0.0
    %52 = vmatpush.msra.mxu0 0.0
    %53 = vmatpush.msra.mxu0 0.0
    %54 = vmatpush.msra.mxu0 0.0
    %55 = vmatpush.msra.mxu0 0.0
    %56 = vmatpush.msra.mxu0 0.0
    %57 = vmatpush.msra.mxu0 0.0
    %58 = vmatpush.msra.mxu0 0.0
    %59 = vmatpush.msra.mxu0 0.0
    %60 = vmatpush.msra.mxu0 %v45
    %61 = vmatpush.msra.mxu0 %v28
    %62 = vmatpush.msra.mxu0 %v27
    %63 = vmatmul.f32.gmra.mxu0 %v32
    %v64 = vpop.f32.mrf.mxu0
    %v65 = vadd.f32 0.0, %v64
    %66 = vmatmul.f32.gmra.mxu0 %v35
    %v67 = vpop.f32.mrf.mxu0
    %v68 = vadd.f32 0.0, %v67
    %69 = vmatmul.f32.gmra.mxu0 %v38
    %v70 = vpop.f32.mrf.mxu0
    %v71 = vadd.f32 0.0, %v70
    %72 = vmatmul.f32.gmra.mxu0 %v41
    %v73 = vpop.f32.mrf.mxu0
    %v74 = vadd.f32 0.0, %v73
    %75 = vdwg.mxu0
    %vm76 = vcmask 326656
    %77 = vst.msk [vmem:[#allocation4] sm:$0xff] %vm76, %v65
    %78 = vst.msk [vmem:[#allocation4 + $0x8] sm:$0xff] %vm76, %v68
    %79 = vst.msk [vmem:[#allocation4 + $0x10] sm:$0xff] %vm76, %v71
    %80 = vst.msk [vmem:[#allocation4 + $0x18] sm:$0xff] %vm76, %v74
    %85 = vrot.lane.b32.xlu0 %v65, 40
    %v86 = vpop.permute.xlu0 %85
    %87 = vrot.lane.b32.xlu0 %v68, 40
    %v88 = vpop.permute.xlu0 %87
    %89 = vrot.lane.b32.xlu0 %v71, 40
    %v90 = vpop.permute.xlu0 %89
    %91 = vrot.lane.b32.xlu0 %v74, 40
    %v92 = vpop.permute.xlu0 %91
    %vm97 = vcmask 654656
    %98 = vst.msk [vmem:[#allocation4] sm:$0xff] %vm97, %v86
    %99 = vst.msk [vmem:[#allocation4 + $0x8] sm:$0xff] %vm97, %v88
    %100 = vst.msk [vmem:[#allocation4 + $0x10] sm:$0xff] %vm97, %v90
    %101 = vst.msk [vmem:[#allocation4 + $0x18] sm:$0xff] %vm97, %v92
    %vm102 = vcmask 671360
    %103 = vst.msk [vmem:[#allocation4] sm:$0xff] %vm102, %v86
    %104 = vst.msk [vmem:[#allocation4 + $0x8] sm:$0xff] %vm102, %v88
    %105 = vst.msk [vmem:[#allocation4 + $0x10] sm:$0xff] %vm102, %v90
    %106 = vst.msk [vmem:[#allocation4 + $0x18] sm:$0xff] %vm102, %v92
    %107 = vrot.lane.b32.xlu0 %v65, 42
    %v108 = vpop.permute.xlu0 %107
    %109 = vrot.lane.b32.xlu0 %v68, 42
    %v110 = vpop.permute.xlu0 %109
    %111 = vrot.lane.b32.xlu0 %v71, 42
    %v112 = vpop.permute.xlu0 %111
    %113 = vrot.lane.b32.xlu0 %v74, 42
    %v114 = vpop.permute.xlu0 %113
    %vm119 = vcmask 687760
    %120 = vst.msk [vmem:[#allocation4] sm:$0xff] %vm119, %v108
    %121 = vst.msk [vmem:[#allocation4 + $0x8] sm:$0xff] %vm119, %v110
    %122 = vst.msk [vmem:[#allocation4 + $0x10] sm:$0xff] %vm119, %v112
    %123 = vst.msk [vmem:[#allocation4 + $0x18] sm:$0xff] %vm119, %v114
    // Predicated region
    $region10: #{tpu_custom_call.1} parent=1 // pred_check
      _
    $region11: #{tpu_custom_call.1} parent=1 // pred_check_branch
      %125 = sbr.rel (0) target = $region13
    $region12: #{tpu_custom_call.1} parent=1 // pred_region
      %127 = vsyncadd [#allocation5], 0
      %s128 = sshll.u32 [#allocation4], 4
      %s129 = int_to_ptr.vmem [resolvable:$true] %s128
      %s130 = sshll.u32 %s3, 4
      %s131 = int_to_ptr.hbm [resolvable:$true] %s130
      %136 = dma.vmem_to_hbm [thread:$0]  %s129, 512, %s131, [#allocation5], 128, 128, 8
    $region13: #{tpu_custom_call.1} parent=1 // pred_fallthru
      _
    // Predicated region
    $region14: #{tpu_custom_call.1} parent=1 // pred_check
      _
    $region15: #{tpu_custom_call.1} parent=1 // pred_check_branch
      %138 = sbr.rel (0) target = $region17
    $region16: #{tpu_custom_call.1} parent=1 // pred_region
      %140 = dma.done [#allocation5], 512
    $region17: #{tpu_custom_call.1} parent=1 // pred_fallthru
      _
    %141 = vsyncpa [#allocation5], 1

</llo_original>
